<compile_context>
chip_gen: v7x
topology: tpu7x:2x2x1
jax: 0.10.0
libtpu: 0.0.40
codegen_flags: <defaults>
</compile_context>

<pallas_src>
import math
import functools

import jax
import jax.numpy as jnp
from jax.experimental import pallas as pl
from jax.experimental.pallas import tpu as pltpu

D_MODEL = 128     # module default is 1024; lane-aligned small size for the demo
MAX_LEN = 80
DROPOUT_P = 0.1


def _pe_kernel(seed_ref, x_ref, pe_ref, o_ref, *, p, training, use_hw_prng):
    """out = one_hot(x) + pe (fused as a select), then inverted dropout."""
    b_tile, s_tile, D = o_ref.shape                          # (b_tile, s_tile, D)

    x = x_ref[...]                                           # (b_tile, s_tile, 1) i32
    lane = jax.lax.broadcasted_iota(jnp.int32, (b_tile, s_tile, D), 2)
    pe_b = pe_ref[...]                                       # (s_tile, D) f32, bcasts
    # Fused one-hot + add: exactly one lane per row gets pe + 1, rest get pe.
    out = jnp.where(lane == x, pe_b + jnp.float32(1.0), pe_b)

    if training and p > 0.0:
        # Integer-threshold dropout: keep w.p. (1 - p); compare top 31 bits as
        # signed int32 (portable, avoids unsigned-compare edge cases).
        thresh = jnp.int32(min(int(round(p * float(1 << 31))), (1 << 31) - 1))
        if use_hw_prng:
            # Hardware PRNG: seed once per block from (seed, grid position).
            pltpu.prng_seed(seed_ref[0], pl.program_id(0), pl.program_id(1))
            bits = pltpu.prng_random_bits((b_tile, s_tile, D))
            if bits.dtype != jnp.uint32:
                bits = pltpu.bitcast(bits, jnp.uint32)
        else:
            # Portable counter-hash fallback (interpret / non-TPU backends).
            # Reuse the lane iota; fold the block offset into a scalar.
            si = pl.program_id(0)
            bi = pl.program_id(1)
            blk = si * pl.num_programs(1) + bi
            b_iota = jax.lax.broadcasted_iota(jnp.int32, (b_tile, s_tile, D), 0)
            r_iota = jax.lax.broadcasted_iota(jnp.int32, (b_tile, s_tile, D), 1)
            idx = (((blk * b_tile + b_iota) * s_tile + r_iota) * D + lane)
            idx = idx.astype(jnp.uint32)
            seed_u = seed_ref[0].astype(jnp.uint32)
            h = idx ^ (seed_u * jnp.uint32(0x9E3779B9) + jnp.uint32(0x7F4A7C15))
            h = h * jnp.uint32(0x9E3779B1)
            h = h ^ (h >> 15)
            h = h * jnp.uint32(0x85EBCA6B)
            h = h ^ (h >> 13)
            bits = h
        bits31 = (bits >> 1).astype(jnp.int32)
        keep = bits31 >= thresh
        out = jnp.where(keep, out * jnp.float32(1.0 / (1.0 - p)), jnp.float32(0.0))

    o_ref[...] = out.astype(o_ref.dtype)


def _pick_tiles(B, S, D, target_bytes=2 * 1024 * 1024):
    """Pick (b_tile, s_tile): ~target_bytes output blocks, >=2 grid steps if possible."""
    row_bytes = D * 4
    max_s = max(8, target_bytes // row_bytes)
    if S <= max_s:
        s_tile = S                       # full seq dim (always a legal block dim)
    else:
        s_tile = None
        t = 8
        while t <= max_s:                # largest multiple-of-8 divisor of S
            if S % t == 0:
                s_tile = t
            t += 8
        if s_tile is None:
            s_tile = S                   # no aligned divisor: take the full dim
    seq_steps = S // s_tile
    min_total_steps = seq_steps * B      # steps if b_tile == 1
    b_tile = 1
    for t in range(1, B + 1):
        if B % t:
            continue
        fits = t * s_tile * row_bytes <= target_bytes
        enough_steps = (seq_steps * (B // t) >= 2) or (min_total_steps < 2)
        if fits and enough_steps:
            b_tile = t
    return b_tile, s_tile


def positional_encoding_forward(x, pe, seed, *, p=DROPOUT_P, training=True,
                                b_tile=None, s_tile=None, use_hw_prng=None):
    """x: [B, S] int32; pe: [S, D] float32; seed: [1] int32 -> [B, S, D] float32."""
    B, S = x.shape
    D = pe.shape[-1]
    if training:
        assert 0.0 <= p < 1.0, "dropout p must be in [0, 1)"
    # Note: D not a multiple of 128 would force masked partial stores (perf only,
    # still correct since the block covers the full lane dim).
    auto_b, auto_s = _pick_tiles(B, S, D)
    if s_tile is None:
        s_tile = auto_s
    if b_tile is None:
        b_tile = auto_b
    assert S % s_tile == 0 and B % b_tile == 0
    if use_hw_prng is None:
        use_hw_prng = jax.devices()[0].platform == "tpu"

    x3 = x.reshape(B, S, 1).astype(jnp.int32)
    kernel = functools.partial(_pe_kernel, p=float(p), training=bool(training),
                               use_hw_prng=bool(use_hw_prng))
    # Batch is the INNER grid axis: the pe block index only changes when the
    # sequence tile changes, so Pallas elides the repeated pe DMA across batch.
    grid = (S // s_tile, B // b_tile)

    # VMEM footprint: double-buffered out + x + pe blocks, plus headroom.
    out_blk = b_tile * s_tile * D * 4
    x_blk = b_tile * s_tile * 4
    pe_blk = s_tile * D * 4
    need = 2 * (out_blk + x_blk + pe_blk) + (1 << 20)
    vmem_limit = int(min(max(need, 16 * 1024 * 1024), 48 * 1024 * 1024))

    ops_per_elem = 4 if (training and p > 0.0) else 2
    cost = pl.CostEstimate(
        flops=B * S * D * ops_per_elem,
        transcendentals=0,
        bytes_accessed=B * S * D * 4 + B * S * 4 + S * D * 4,   # pe read once
    )

    return pl.pallas_call(
        kernel,
        out_shape=jax.ShapeDtypeStruct((B, S, D), jnp.float32),
        grid=grid,
        in_specs=[
            pl.BlockSpec(memory_space=pltpu.MemorySpace.SMEM),              # seed
            pl.BlockSpec((b_tile, s_tile, 1), lambda si, bi: (bi, si, 0)),  # ids
            pl.BlockSpec((s_tile, D), lambda si, bi: (si, 0)),              # pe
        ],
        out_specs=pl.BlockSpec((b_tile, s_tile, D), lambda si, bi: (bi, si, 0)),
        compiler_params=pltpu.CompilerParams(
            dimension_semantics=("parallel", "parallel"),
            vmem_limit_bytes=vmem_limit,
        ),
        cost_estimate=cost,
    )(seed, x3, pe)


def make_pe_table(d_model=D_MODEL, max_len=MAX_LEN):
    """Deterministic sinusoidal table, same formula as the PyTorch __init__."""
    assert d_model % 2 == 0, "even d_model assumed (as in the PyTorch module defaults)"
    position = jnp.arange(max_len, dtype=jnp.float32)[:, None]          # (L, 1)
    div_term = jnp.exp(
        jnp.arange(0, d_model, 2, dtype=jnp.float32) * (-math.log(10000.0) / d_model)
    )                                                                    # (D/2,)
    pe = jnp.zeros((max_len, d_model), jnp.float32)
    pe = pe.at[:, 0::2].set(jnp.sin(position * div_term))
    pe = pe.at[:, 1::2].set(jnp.cos(position * div_term))
    return pe


if __name__ == "__main__":
    B, S = 2, 8
    key = jax.random.PRNGKey(0)
    # NOTE: token ids >= d_model (or negative) give an all-zero one-hot row
    # (jax.nn.one_hot semantics) whereas torch.nn.functional.one_hot would raise.
    x = jax.random.randint(key, (B, S), 0, D_MODEL, dtype=jnp.int32)
    pe_full = make_pe_table()
    pe = pe_full[:S]                                   # pe[:, :seq_len]
    seed = jnp.array([123], dtype=jnp.int32)

    # Eval-mode (dropout = identity) check against a plain-JAX reference.
    out_eval = positional_encoding_forward(x, pe, seed, training=False)
    out_eval = jax.block_until_ready(out_eval)
    ref = jax.nn.one_hot(x, D_MODEL, dtype=jnp.float32) + pe[None, :, :]
    assert out_eval.shape == (B, S, D_MODEL)
    assert jnp.allclose(out_eval, ref, atol=1e-6), "mismatch vs reference"

    # Train-mode (dropout active, hardware PRNG on TPU).
    # TODO(synk): dropout mask stream is deterministic from `seed` but will never
    # bit-match PyTorch's RNG (expected for any port).
    out_train = positional_encoding_forward(x, pe, seed, training=True)
    out_train = jax.block_until_ready(out_train)
    assert out_train.shape == (B, S, D_MODEL)
    assert bool(jnp.all(jnp.isfinite(out_train)))
    assert not bool(jnp.allclose(out_train, out_eval)), "dropout had no effect"

    print("KERNEL_OK")
</pallas_src>

<mosaic_0001>
module attributes {stable_mosaic.version = 11 : i64} {
  func.func @_pe_kernel(%arg0: i32, %arg1: i32, %arg2: memref<1xi32, #tpu.memory_space<smem>>, %arg3: memref<1x8x1xi32, #tpu.memory_space<vmem>>, %arg4: memref<8x128xf32, #tpu.memory_space<vmem>>, %arg5: memref<1x8x128xf32, #tpu.memory_space<vmem>>) attributes {dimension_semantics = [#tpu.dimension_semantics<parallel>, #tpu.dimension_semantics<parallel>], iteration_bounds = array<i64: 1, 2>, scalar_prefetch = 0 : i64, scratch_operands = 0 : i64, tpu.core_type = #tpu.core_type<tc>, window_params = [{transform_indices = @transform_0, window_bounds = array<i64: 1>}, {transform_indices = @transform_1, window_bounds = array<i64: 1, 8, 1>}, {transform_indices = @transform_2, window_bounds = array<i64: 8, 128>}, {transform_indices = @transform_3, window_bounds = array<i64: 1, 8, 128>}]} {
    %c0 = arith.constant 0 : index
    %c0_0 = arith.constant 0 : index
    %c0_1 = arith.constant 0 : index
    %0 = vector.load %arg3[%c0, %c0_0, %c0_1] : memref<1x8x1xi32, #tpu.memory_space<vmem>>, vector<1x8x1xi32>
    %1 = tpu.iota {dimensions = array<i32: 2>} : vector<1x8x128xi32>
    %c0_2 = arith.constant 0 : index
    %c0_3 = arith.constant 0 : index
    %2 = vector.load %arg4[%c0_2, %c0_3] : memref<8x128xf32, #tpu.memory_space<vmem>>, vector<8x128xf32>
    %3 = vector.broadcast %0 : vector<1x8x1xi32> to vector<1x8x128xi32>
    %4 = arith.cmpi eq, %1, %3 : vector<1x8x128xi32>
    %cst = arith.constant 1.000000e+00 : f32
    %5 = vector.broadcast %cst : f32 to vector<8x128xf32>
    %6 = arith.addf %2, %5 : vector<8x128xf32>
    %7 = vector.shape_cast %6 : vector<8x128xf32> to vector<1x8x128xf32>
    %8 = vector.shape_cast %2 : vector<8x128xf32> to vector<1x8x128xf32>
    %9 = arith.select %4, %7, %8 : vector<1x8x128xi1>, vector<1x8x128xf32>
    %c0_4 = arith.constant 0 : index
    %c0_5 = arith.constant 0 : index
    %c0_6 = arith.constant 0 : index
    %10 = vector.load %arg5[%c0_4, %c0_5, %c0_6] : memref<1x8x128xf32, #tpu.memory_space<vmem>>, vector<1x8x128xf32>
    tpu.vector_store %arg5[%c0_4, %c0_5, %c0_6], %9 {strides = array<i32>} : memref<1x8x128xf32, #tpu.memory_space<vmem>>, vector<1x8x128xf32>,
    return
  }
  func.func @transform_0(%arg0: i32, %arg1: i32) -> i32 {
    %c0_i32 = arith.constant 0 : i32
    %c0_i32_0 = arith.constant 0 : i32
    return %c0_i32 : i32
  }
  func.func @transform_1(%arg0: i32, %arg1: i32) -> (i32, i32, i32) {
    %c0_i32 = arith.constant 0 : i32
    %c0_i32_0 = arith.constant 0 : i32
    return %arg1, %arg0, %c0_i32 : i32, i32, i32
  }
  func.func @transform_2(%arg0: i32, %arg1: i32) -> (i32, i32) {
    %c0_i32 = arith.constant 0 : i32
    %c0_i32_0 = arith.constant 0 : i32
    return %arg0, %c0_i32 : i32, i32
  }
  func.func @transform_3(%arg0: i32, %arg1: i32) -> (i32, i32, i32) {
    %c0_i32 = arith.constant 0 : i32
    %c0_i32_0 = arith.constant 0 : i32
    return %arg1, %arg0, %c0_i32 : i32, i32, i32
  }
}

</mosaic_0001>

<llo_original>
// kernel: tpu_custom_call.1
$region0: #{tpu_custom_call.1}
  #allocation0 [shape = 'u32[]', space=smem, size = 0x4, offset = 0x4, fixed_abs, tag = 'smem constant byte address 0x4 - core index']
  #allocation1 [shape = 'u32[144,128]{1,0:T(1,128)}', space=vmem, size = 0x12000, scoped, tag = 'internal scratch']
  #allocation2 [shape = 's32[1]{0:T(128)S(6)}', space=smem, size = 0x200, scoped, tag = 'scoped memory for tpu_custom_call.1']
  %s0 = inlined_call_operand.<no memory space> [shape: s32[1], index: 0, kind: input, shape index: {}]
  %s1 = inlined_call_operand.vmem [shape: s32[2,8,1], index: 1, kind: input, shape index: {}]
  %s2 = inlined_call_operand.vmem [shape: f32[8,128], index: 2, kind: input, shape index: {}]
  %s3 = inlined_call_operand.hbm [shape: f32[2,8,128], index: 3, kind: output, shape index: {}]
  %s4 = sld [smem:[#allocation0]]
  $region45: #{tpu_custom_call.1} parent=0
    _
  %s6 = ssub.s32 1, %s4
  %s7 = scalar_select 0, %s6, %s4
  %8 = sst [smem:[#allocation2]] %s0
  $region1: #{tpu_custom_call.1} parent=0
    #allocation3 [shape = 'u8[8192]{0}', space=vmem, size = 0x2000, scoped, tag = 'output window, operand 0']
    #allocation4 [shape = 's32[2]{0}', space=sflag, size = 0x8, scoped, tag = 'scoped memory for tpu_custom_call.1']
    %9 = vsyncpa [#allocation4], 0
    %s10 = scalar_lea.sflag [#allocation4], 1
    %11 = vsyncpa %s10, 0
    loop: start=0, step=1, limit=4
    $region2: #{tpu_custom_call.1} parent=1 // loop_pre_header
      _
    $region3: #{tpu_custom_call.1} parent=1 // loop_header
      %s13 = sphi 0, %s17
      %p14 = scmp.ge.s32.totalorder %s13, 4
      %s20 = sphi 0, %s32
      %s21 = sphi 0, %s28
      %s22 = sphi 0, %s20
      %s23 = sphi 0, %s21
      %s24 = sphi 0, %s22
      %s25 = sphi 0, %s23
      %s33 = sphi 0, %s33
      %s35 = sphi 0, %s33
      %s36 = sphi 0, %s35
      %s50 = sphi 0, %s36
      %s58 = sphi 0, %s60
      %s61 = sphi 0, %s58
      %s62 = sphi 0, %s61
      %s78 = sphi 0, %s62
      %s84 = sphi 0, %s86
      %s87 = sphi 0, %s84
      %s88 = sphi 0, %s87
      %s104 = sphi 0, %s88
      %s112 = sphi 0, %s114
      %s115 = sphi 0, %s112
      %s116 = sphi 0, %s115
      %s132 = sphi 0, %s116
    $region4: #{tpu_custom_call.1} parent=1 // loop_header_branch
      %16 = sbr.rel (%p14) target = $region8
    $region5: #{tpu_custom_call.1} parent=1 // loop_body
      %s18 = ssub.s32 %s13, 1
      %s19 = ssub.s32 %s13, 2
      %s26 = sadd.s32 1, %s21
      %p27 = scmp.ge.s32.totalorder %s26, 2
      %s28 = scalar_select %p27, 0, %s26
      %s29 = sadd.s32 1, %s20
      %s30 = scalar_select %p27, %s29, %s20
      %p31 = scmp.ge.s32.totalorder %s30, 1
      %s32 = scalar_select %p31, 0, %s30
      %s34 = sadd.s32 %s33, 1
      %p37 = scmp.eq.s32.totalorder %s13, 1
      %p38 = scmp.ne.s32.totalorder %s33, %s35
      %p39 = scmp.eq.s32.totalorder %s13, 0
      %p40 = por %p38, %p39
      %p41 = scmp.ne.s32.totalorder %s33, %s35
      %p42 = scmp.eq.s32.totalorder %s18, 1
      %p43 = por %p41, %p42
      %p44 = scmp.ne.s32.totalorder %s35, %s36
      %p45 = scmp.eq.s32.totalorder %s18, 0
      %p46 = por %p44, %p45
      %p47 = scmp.ne.s32.totalorder %s35, %s36
      %p48 = scmp.eq.s32.totalorder %s19, 1
      %p49 = por %p47, %p48
      %p51 = scmp.ne.s32.totalorder %s36, %s50
      %p52 = scmp.eq.s32.totalorder %s19, 0
      %p53 = por %p51, %p52
      %s54 = ssub.s32 %s21, %s28
      %s55 = ssub.s32 %s20, %s32
      %s56 = sor.u32 %s54, %s55
      %p57 = scmp.eq.s32.totalorder %s56, 0
      %s59 = sadd.s32 %s58, 1
      %s60 = scalar_select %p57, %s58, %s59
      %p63 = pneg %p57
      %p64 = scmp.eq.s32.totalorder %s13, 1
      %p65 = por %p63, %p64
      %p66 = scmp.ne.s32.totalorder %s58, %s61
      %p67 = scmp.eq.s32.totalorder %s13, 0
      %p68 = por %p66, %p67
      %p69 = scmp.ne.s32.totalorder %s58, %s61
      %p70 = scmp.eq.s32.totalorder %s18, 1
      %p71 = por %p69, %p70
      %p72 = scmp.ne.s32.totalorder %s61, %s62
      %p73 = scmp.eq.s32.totalorder %s18, 0
      %p74 = por %p72, %p73
      %p75 = scmp.ne.s32.totalorder %s61, %s62
      %p76 = scmp.eq.s32.totalorder %s19, 1
      %p77 = por %p75, %p76
      %p79 = scmp.ne.s32.totalorder %s62, %s78
      %p80 = scmp.eq.s32.totalorder %s19, 0
      %p81 = por %p79, %p80
      %s82 = ssub.s32 %s20, %s32
      %p83 = scmp.eq.s32.totalorder %s82, 0
      %s85 = sadd.s32 %s84, 1
      %s86 = scalar_select %p83, %s84, %s85
      %p89 = pneg %p83
      %p90 = scmp.eq.s32.totalorder %s13, 1
      %p91 = por %p89, %p90
      %p92 = scmp.ne.s32.totalorder %s84, %s87
      %p93 = scmp.eq.s32.totalorder %s13, 0
      %p94 = por %p92, %p93
      %p95 = scmp.ne.s32.totalorder %s84, %s87
      %p96 = scmp.eq.s32.totalorder %s18, 1
      %p97 = por %p95, %p96
      %p98 = scmp.ne.s32.totalorder %s87, %s88
      %p99 = scmp.eq.s32.totalorder %s18, 0
      %p100 = por %p98, %p99
      %p101 = scmp.ne.s32.totalorder %s87, %s88
      %p102 = scmp.eq.s32.totalorder %s19, 1
      %p103 = por %p101, %p102
      %p105 = scmp.ne.s32.totalorder %s88, %s104
      %p106 = scmp.eq.s32.totalorder %s19, 0
      %p107 = por %p105, %p106
      %s108 = ssub.s32 %s21, %s28
      %s109 = ssub.s32 %s20, %s32
      %s110 = sor.u32 %s108, %s109
      %p111 = scmp.eq.s32.totalorder %s110, 0
      %s113 = sadd.s32 %s112, 1
      %s114 = scalar_select %p111, %s112, %s113
      %p117 = pneg %p111
      %p118 = scmp.eq.s32.totalorder %s13, 1
      %p119 = por %p117, %p118
      %p120 = scmp.ne.s32.totalorder %s112, %s115
      %p121 = scmp.eq.s32.totalorder %s13, 0
      %p122 = por %p120, %p121
      %p123 = scmp.ne.s32.totalorder %s112, %s115
      %p124 = scmp.eq.s32.totalorder %s18, 1
      %p125 = por %p123, %p124
      %p126 = scmp.ne.s32.totalorder %s115, %s116
      %p127 = scmp.eq.s32.totalorder %s18, 0
      %p128 = por %p126, %p127
      %p129 = scmp.ne.s32.totalorder %s115, %s116
      %p130 = scmp.eq.s32.totalorder %s19, 1
      %p131 = por %p129, %p130
      %p133 = scmp.ne.s32.totalorder %s116, %s132
      %p134 = scmp.eq.s32.totalorder %s19, 0
      %p135 = por %p133, %p134
      %p136 = scmp.le.s32.totalorder 1, %s13
      %p137 = scmp.lt.s32.totalorder %s13, 3
      %p138 = pnand %p136, %p137
      %p139 = pneg %p138
      // Predicated region
      $region9: #{tpu_custom_call.1} parent=5 // pred_check
        _
      $region10: #{tpu_custom_call.1} parent=5 // pred_check_branch
        %141 = sbr.rel (%p138) target = $region12
      $region11: #{tpu_custom_call.1} parent=5 // pred_region
        %s142 = ssub.s32 %s13, 1
        // Predicated region
        $region13: #{tpu_custom_call.1} parent=11 // pred_check
          %p143 = pneg %p46
        $region14: #{tpu_custom_call.1} parent=11 // pred_check_branch
          %145 = sbr.rel (%p143) target = $region16
        $region15: #{tpu_custom_call.1} parent=11 // pred_region
          _
        $region16: #{tpu_custom_call.1} parent=11 // pred_fallthru
          _
        // Predicated region
        $region17: #{tpu_custom_call.1} parent=11 // pred_check
          %p146 = pneg %p100
        $region18: #{tpu_custom_call.1} parent=11 // pred_check_branch
          %148 = sbr.rel (%p146) target = $region20
        $region19: #{tpu_custom_call.1} parent=11 // pred_region
          %p149 = scmp.lt.s32.totalorder %s22, 0
          %s150 = scalar_select %p149, %s22, 0
          %s151 = smul.addr %s150, 8
          %s152 = scalar_lea.vmem %s2, %s151
        $region20: #{tpu_custom_call.1} parent=11 // pred_fallthru
          _
      $region12: #{tpu_custom_call.1} parent=5 // pred_fallthru
        _
      %p153 = scmp.lt.s32.totalorder %s13, 2
      // Predicated region
      $region21: #{tpu_custom_call.1} parent=5 // pred_check
        %p154 = pneg %p153
      $region22: #{tpu_custom_call.1} parent=5 // pred_check_branch
        %156 = sbr.rel (%p154) target = $region24
      $region23: #{tpu_custom_call.1} parent=5 // pred_region
        // Predicated region
        $region25: #{tpu_custom_call.1} parent=23 // pred_check
          %p157 = pneg %p68
        $region26: #{tpu_custom_call.1} parent=23 // pred_check_branch
          %159 = sbr.rel (%p157) target = $region28
        $region27: #{tpu_custom_call.1} parent=23 // pred_region
          %p160 = scmp.lt.s32.totalorder %s21, 1
          %s161 = scalar_select %p160, %s21, 1
          %p162 = scmp.lt.s32.totalorder %s20, 0
          %s163 = scalar_select %p162, %s20, 0
          %s164 = sadd.s32 %s163, %s161
          %s165 = smul.addr %s164, 8
          %s166 = scalar_lea.vmem %s1, %s165
        $region28: #{tpu_custom_call.1} parent=23 // pred_fallthru
          _
      $region24: #{tpu_custom_call.1} parent=5 // pred_fallthru
        _
      %p167 = scmp.le.s32.totalorder 1, %s13
      %p168 = scmp.lt.s32.totalorder %s13, 3
      %p169 = pnand %p167, %p168
      %p170 = pneg %p169
      // Predicated region
      $region29: #{tpu_custom_call.1} parent=5 // pred_check
        _
      $region30: #{tpu_custom_call.1} parent=5 // pred_check_branch
        %172 = sbr.rel (%p169) target = $region32
      $region31: #{tpu_custom_call.1} parent=5 // pred_region
        %s173 = ssub.s32 %s13, 1
        %p174 = pneg %p46
        %p175 = pneg %p43
        %p176 = scmp.lt.s32.totalorder %s23, 1
        %s177 = scalar_select %p176, %s23, 1
        %p178 = scmp.lt.s32.totalorder %s22, 0
        %s179 = scalar_select %p178, %s22, 0
        %s180 = sadd.s32 %s179, %s177
        %s181 = smul.addr %s180, 8
        %s182 = scalar_lea.vmem %s1, %s181
        %p183 = pneg %p74
        %p184 = pneg %p71
        %p185 = scmp.lt.s32.totalorder %s22, 0
        %s186 = scalar_select %p185, %s22, 0
        %s187 = smul.addr %s186, 8
        %s188 = scalar_lea.vmem %s2, %s187
        %p189 = pneg %p100
        %p190 = pneg %p97
        %p191 = pneg %p128
        %p192 = pneg %p125
        %s193 = sand.u32 %s115, 1
        %s194 = scalar_lea.sflag [#allocation4], %s193
        %s195 = sand.u32 %s115, 1
        %s196 = smul.addr %s195, 8
        %s197 = scalar_lea.vmem [#allocation3], %s196
        %p198 = scmp.lt.s32.totalorder %s23, 1
        %s199 = scalar_select %p198, %s23, 1
        %p200 = scmp.lt.s32.totalorder %s22, 0
        %s201 = scalar_select %p200, %s22, 0
        %s202 = sadd.s32 %s201, %s199
        %s203 = smul.addr %s202, 8
        %s204 = scalar_lea.vmem %s1, %s203
        %p205 = scmp.lt.s32.totalorder %s22, 0
        %s206 = scalar_select %p205, %s22, 0
        %s207 = smul.addr %s206, 8
        %s208 = scalar_lea.vmem %s2, %s207
        %v209 = vld [vmem:[%s204] sm:$0xff]
        %v210 = vlaneseq
        %v211 = vand.u32 %v210, 127
        %v212 = vld [vmem:[%s208] sm:$0xff]
        %213 = vset.pattern.permute.xlu0 0
        %214 = vperm.xlu0 %213, %v209
        %v215 = vpop.permute.xlu0 %214
        %vm216 = vcmp.eq.s32.totalorder %v211, %v215
        %v217 = vadd.f32 %v212, 1.0
        %v218 = vsel %vm216, %v217, %v212
        %219 = vst [vmem:[%s197] sm:$0xff] %v218
        %s220 = sand.u32 %s115, 1
        %s221 = scalar_lea.sflag [#allocation4], %s220
        %s222 = sand.u32 %s115, 1
        %s223 = smul.addr %s222, 8
        %s224 = scalar_lea.vmem [#allocation3], %s223
        // Predicated region
        $region33: #{tpu_custom_call.1} parent=31 // pred_check
          %p225 = pneg %p125
        $region34: #{tpu_custom_call.1} parent=31 // pred_check_branch
          %227 = sbr.rel (%p225) target = $region36
        $region35: #{tpu_custom_call.1} parent=31 // pred_region
          %s229 = ssub.s32 128, 128
          %230 = vsyncadd %s221, %s229
          %s231 = sadd.s32 %s22, %s23
          %s232 = smul.addr %s231, 128
          %s233 = scalar_lea.hbm %s3, %s232
          %s235 = sshll.u32 %s224, 4
          %s236 = int_to_ptr.vmem [resolvable:$true] %s235
          %238 = dma.vmem_to_hbm [thread:$0]  %s236, 128, %s233, %s221
        $region36: #{tpu_custom_call.1} parent=31 // pred_fallthru
          _
      $region32: #{tpu_custom_call.1} parent=5 // pred_fallthru
        _
      %p239 = scmp.le.s32.totalorder 2, %s13
      // Predicated region
      $region37: #{tpu_custom_call.1} parent=5 // pred_check
        %p240 = pneg %p239
      $region38: #{tpu_custom_call.1} parent=5 // pred_check_branch
        %242 = sbr.rel (%p240) target = $region40
      $region39: #{tpu_custom_call.1} parent=5 // pred_region
        %s243 = ssub.s32 %s13, 2
        // Predicated region
        $region41: #{tpu_custom_call.1} parent=39 // pred_check
          %p244 = pneg %p131
        $region42: #{tpu_custom_call.1} parent=39 // pred_check_branch
          %246 = sbr.rel (%p244) target = $region44
        $region43: #{tpu_custom_call.1} parent=39 // pred_region
          %s247 = sand.u32 %s116, 1
          %s248 = scalar_lea.sflag [#allocation4], %s247
          %s249 = sand.u32 %s116, 1
          %s250 = smul.addr %s249, 8
          %s251 = scalar_lea.vmem [#allocation3], %s250
          %252 = dma.done %s248, 128
        $region44: #{tpu_custom_call.1} parent=39 // pred_fallthru
          _
      $region40: #{tpu_custom_call.1} parent=5 // pred_fallthru
        _
    $region6: #{tpu_custom_call.1} parent=1 // loop_footer
      %s17 = sadd.s32 1, %s13
    $region7: #{tpu_custom_call.1} parent=1 // loop_footer_branch
      %12 = sbr.rel target = $region3
    $region8: #{tpu_custom_call.1} parent=1 // loop_exit
      _
    %253 = vsyncpa [#allocation4], 1
    %s254 = scalar_lea.sflag [#allocation4], 1
    %255 = vsyncpa %s254, 1

</llo_original>
